<compile_context>
chip_gen: v7x
topology: tpu7x:2x2x1
jax: 0.10.0
libtpu: 0.0.40
codegen_flags: <defaults>
</compile_context>

<pallas_src>
import math

import jax
import jax.numpy as jnp
from jax.experimental import pallas as pl
from jax.experimental.pallas import tpu as pltpu


# ---------------------------------------------------------------------------
# Table construction (matches torch `rotary_embedding`; plain JAX, done once
# at layer init just like the PyTorch __init__ — not a hot path).
# ---------------------------------------------------------------------------

def rotary_tables(dim, max_len=512, dtype=jnp.float32):
    assert dim % 2 == 0, "rotary dim must be even"
    inv_freq = 1.0 / (10000.0 ** (jnp.arange(0, dim, 2, dtype=jnp.float32) / dim))
    t = jnp.arange(max_len, dtype=jnp.float32)
    freqs = t[:, None] * inv_freq[None, :]                      # (max_len, dim//2)
    emb = jnp.concatenate([freqs, freqs], axis=-1)              # (max_len, dim)
    return jnp.sin(emb).astype(dtype), jnp.cos(emb).astype(dtype)


# ---------------------------------------------------------------------------
# Pallas kernel
# ---------------------------------------------------------------------------

def _rotary_kernel(qk_ref, cos_ref, sin_ref, o_ref):
    # qk/cos/sin/o blocks: (seq_tile, dim); batch dim is squeezed by BlockSpec.
    qk = qk_ref[...]
    cos = cos_ref[...]
    sin = sin_ref[...]
    # torch.roll(qk, 1, dims=-1): out[..., i] = qk[..., (i-1) % dim]
    # -> XLU lane rotation (separate bundle slot from the VPU multiplies).
    rolled = pltpu.roll(qk, 1, 1)
    o_ref[...] = (qk * cos + rolled * sin).astype(o_ref.dtype)


def apply_rotary_emb_pallas(qk, cos, sin, *, seq_tile=512):
    """qk: (..., L, dim); cos/sin: (L, dim) -> (..., L, dim)."""
    orig_shape = qk.shape
    L, D = orig_shape[-2], orig_shape[-1]
    assert cos.shape == (L, D) and sin.shape == (L, D)

    B = math.prod(orig_shape[:-2]) if len(orig_shape) > 2 else 1
    x = qk.reshape(B, L, D)

    # Seq tile: full L when small, otherwise a multiple of 8 sublanes.
    ts = L if L <= seq_tile else seq_tile
    grid = (pl.cdiv(L, ts), B)          # seq outer, batch inner (cos/sin reuse)

    out_dtype = jnp.promote_types(qk.dtype, cos.dtype)
    out = pl.pallas_call(
        _rotary_kernel,
        out_shape=jax.ShapeDtypeStruct((B, L, D), out_dtype),
        grid=grid,
        in_specs=[
            pl.BlockSpec((None, ts, D), lambda s, b: (b, s, 0)),   # qk
            pl.BlockSpec((ts, D), lambda s, b: (s, 0)),            # cos (batch-invariant)
            pl.BlockSpec((ts, D), lambda s, b: (s, 0)),            # sin (batch-invariant)
        ],
        out_specs=pl.BlockSpec((None, ts, D), lambda s, b: (b, s, 0)),
        compiler_params=pltpu.CompilerParams(
            dimension_semantics=("parallel", "parallel"),
            vmem_limit_bytes=32 * 1024 * 1024,   # fits v7x (64 MiB) and v5e/v6e
        ),
    )(x, cos, sin)
    return out.reshape(orig_shape[:-2] + (L, D)).astype(out_dtype)


# ---------------------------------------------------------------------------
# Module wrapper (mirrors the PyTorch RotaryEmbeddingLayer)
# ---------------------------------------------------------------------------

class RotaryEmbeddingLayer:
    def __init__(self, dim, max_len=512):
        self.sin, self.cos = rotary_tables(dim, max_len)
        self.dim = dim
        self.max_len = max_len

    def __call__(self, qk):
        # PyTorch broadcast requires qk.shape[-2:] == (max_len, dim).
        assert qk.shape[-1] == self.dim and qk.shape[-2] == self.max_len
        return apply_rotary_emb_pallas(qk, self.cos, self.sin)


# ---------------------------------------------------------------------------
# Pure-JAX reference (same math) for a sanity check.
# ---------------------------------------------------------------------------

def reference_apply_rotary(qk, cos, sin):
    return qk * cos + jnp.roll(qk, 1, axis=-1) * sin


# ---------------------------------------------------------------------------
# Main
# ---------------------------------------------------------------------------

if __name__ == "__main__":
    dim = 128        # rotary head dim (lane-dense: multiple of 128)
    max_len = 128    # sequence length == table length (matches torch broadcast)
    batch = 2
    heads = 4

    key = jax.random.PRNGKey(0)
    qk = jax.random.normal(key, (batch, heads, max_len, dim), jnp.float32)

    layer = RotaryEmbeddingLayer(dim, max_len)
    out = layer(qk)
    out = jax.block_until_ready(out)

    ref = reference_apply_rotary(qk, layer.cos, layer.sin)
    assert out.shape == qk.shape
    max_err = jnp.max(jnp.abs(out - ref))
    assert jnp.allclose(out, ref, atol=1e-5, rtol=1e-5), (
        f"max abs diff = {max_err}")

    print("KERNEL_OK")
</pallas_src>

<mosaic_0001>
module attributes {stable_mosaic.version = 11 : i64} {
  func.func @_rotary_kernel(%arg0: i32, %arg1: i32, %arg2: memref<1x128x128xf32, #tpu.memory_space<vmem>>, %arg3: memref<128x128xf32, #tpu.memory_space<vmem>>, %arg4: memref<128x128xf32, #tpu.memory_space<vmem>>, %arg5: memref<1x128x128xf32, #tpu.memory_space<vmem>>) attributes {dimension_semantics = [#tpu.dimension_semantics<parallel>, #tpu.dimension_semantics<parallel>], iteration_bounds = array<i64: 1, 8>, scalar_prefetch = 0 : i64, scratch_operands = 0 : i64, tpu.core_type = #tpu.core_type<tc>, window_params = [{transform_indices = @transform_0, window_bounds = array<i64: 1, 128, 128>}, {transform_indices = @transform_1, window_bounds = array<i64: 128, 128>}, {transform_indices = @transform_2, window_bounds = array<i64: 128, 128>}, {transform_indices = @transform_3, window_bounds = array<i64: 1, 128, 128>}]} {
    %c0 = arith.constant 0 : index
    %c0_0 = arith.constant 0 : index
    %c0_1 = arith.constant 0 : index
    %0 = vector.load %arg2[%c0, %c0_0, %c0_1] : memref<1x128x128xf32, #tpu.memory_space<vmem>>, vector<1x128x128xf32>
    %1 = vector.shape_cast %0 : vector<1x128x128xf32> to vector<128x128xf32>
    %c0_2 = arith.constant 0 : index
    %c0_3 = arith.constant 0 : index
    %2 = vector.load %arg3[%c0_2, %c0_3] : memref<128x128xf32, #tpu.memory_space<vmem>>, vector<128x128xf32>
    %c0_4 = arith.constant 0 : index
    %c0_5 = arith.constant 0 : index
    %3 = vector.load %arg4[%c0_4, %c0_5] : memref<128x128xf32, #tpu.memory_space<vmem>>, vector<128x128xf32>
    %c1_i32 = arith.constant 1 : i32
    %4 = tpu.dynamic_rotate %1 by %c1_i32 dim 1 : vector<128x128xf32>, i32 -> vector<128x128xf32>
    %5 = arith.mulf %1, %2 : vector<128x128xf32>
    %6 = arith.mulf %4, %3 : vector<128x128xf32>
    %7 = arith.addf %5, %6 : vector<128x128xf32>
    %c0_6 = arith.constant 0 : index
    %c0_7 = arith.constant 0 : index
    %c0_8 = arith.constant 0 : index
    %8 = vector.load %arg5[%c0_6, %c0_7, %c0_8] : memref<1x128x128xf32, #tpu.memory_space<vmem>>, vector<1x128x128xf32>
    %9 = vector.shape_cast %8 : vector<1x128x128xf32> to vector<128x128xf32>
    %10 = vector.shape_cast %7 : vector<128x128xf32> to vector<1x128x128xf32>
    tpu.vector_store %arg5[%c0_6, %c0_7, %c0_8], %10 {strides = array<i32>} : memref<1x128x128xf32, #tpu.memory_space<vmem>>, vector<1x128x128xf32>,
    return
  }
  func.func @transform_0(%arg0: i32, %arg1: i32) -> (i32, i32, i32) {
    %c0_i32 = arith.constant 0 : i32
    %c0_i32_0 = arith.constant 0 : i32
    return %arg1, %arg0, %c0_i32 : i32, i32, i32
  }
  func.func @transform_1(%arg0: i32, %arg1: i32) -> (i32, i32) {
    %c0_i32 = arith.constant 0 : i32
    %c0_i32_0 = arith.constant 0 : i32
    return %arg0, %c0_i32 : i32, i32
  }
  func.func @transform_2(%arg0: i32, %arg1: i32) -> (i32, i32) {
    %c0_i32 = arith.constant 0 : i32
    %c0_i32_0 = arith.constant 0 : i32
    return %arg0, %c0_i32 : i32, i32
  }
  func.func @transform_3(%arg0: i32, %arg1: i32) -> (i32, i32, i32) {
    %c0_i32 = arith.constant 0 : i32
    %c0_i32_0 = arith.constant 0 : i32
    return %arg1, %arg0, %c0_i32 : i32, i32, i32
  }
}

</mosaic_0001>

<llo_original>
// kernel: tpu_custom_call.1
$region0: #{tpu_custom_call.1}
  #allocation0 [shape = 'u32[]', space=smem, size = 0x4, offset = 0x4, fixed_abs, tag = 'smem constant byte address 0x4 - core index']
  #allocation1 [shape = 'u32[144,128]{1,0:T(1,128)}', space=vmem, size = 0x12000, scoped, tag = 'internal scratch']
  %s0 = inlined_call_operand.hbm [shape: f32[8,128,128], index: 0, kind: input, shape index: {}]
  %s1 = inlined_call_operand.hbm [shape: f32[128,128], index: 1, kind: input, shape index: {}]
  %s2 = inlined_call_operand.hbm [shape: f32[128,128], index: 2, kind: input, shape index: {}]
  %s3 = inlined_call_operand.hbm [shape: f32[8,128,128], index: 3, kind: output, shape index: {}]
  %s4 = sld [smem:[#allocation0]]
  $region57: #{tpu_custom_call.1} parent=0
    _
  %s6 = ssub.s32 1, %s4
  %s7 = scalar_select 0, %s6, %s4
  $region1: #{tpu_custom_call.1} parent=0
    #allocation2 [shape = 'u8[131072]{0}', space=vmem, size = 0x20000, scoped, tag = 'input window, operand 0']
    #allocation3 [shape = 's32[2]{0}', space=sflag, size = 0x8, scoped, tag = 'scoped memory for tpu_custom_call.1']
    #allocation4 [shape = 's32[2]{0}', space=sflag, size = 0x8, scoped, tag = 'scoped memory for tpu_custom_call.1']
    #allocation5 [shape = 'u8[65536]{0}', space=vmem, size = 0x10000, scoped, tag = 'input window, operand 1, single buffered']
    #allocation6 [shape = 's32[1]{0}', space=sflag, size = 0x4, scoped, tag = 'scoped memory for tpu_custom_call.1']
    #allocation7 [shape = 'u8[65536]{0}', space=vmem, size = 0x10000, scoped, tag = 'input window, operand 2, single buffered']
    #allocation8 [shape = 'u8[131072]{0}', space=vmem, size = 0x20000, scoped, tag = 'output window, operand 0']
    %8 = vsyncpa [#allocation3], 0
    %s9 = scalar_lea.sflag [#allocation3], 1
    %10 = vsyncpa %s9, 0
    %11 = vsyncpa [#allocation6], 0
    %12 = vsyncpa [#allocation4], 0
    %s13 = scalar_lea.sflag [#allocation4], 1
    %14 = vsyncpa %s13, 0
    loop: start=0, step=1, limit=10
    $region2: #{tpu_custom_call.1} parent=1 // loop_pre_header
      _
    $region3: #{tpu_custom_call.1} parent=1 // loop_header
      %s16 = sphi 0, %s20
      %p17 = scmp.ge.s32.totalorder %s16, 10
      %s23 = sphi 0, %s35
      %s24 = sphi 0, %s31
      %s25 = sphi 0, %s23
      %s26 = sphi 0, %s24
      %s27 = sphi 0, %s25
      %s28 = sphi 0, %s26
      %s40 = sphi 0, %s42
      %s43 = sphi 0, %s40
      %s44 = sphi 0, %s43
      %s60 = sphi 0, %s44
      %s66 = sphi 0, %s68
      %s69 = sphi 0, %s66
      %s70 = sphi 0, %s69
      %s86 = sphi 0, %s70
      %s92 = sphi 0, %s94
      %s95 = sphi 0, %s92
      %s96 = sphi 0, %s95
      %s112 = sphi 0, %s96
      %s120 = sphi 0, %s122
      %s123 = sphi 0, %s120
      %s124 = sphi 0, %s123
      %s140 = sphi 0, %s124
    $region4: #{tpu_custom_call.1} parent=1 // loop_header_branch
      %19 = sbr.rel (%p17) target = $region8
    $region5: #{tpu_custom_call.1} parent=1 // loop_body
      %s21 = ssub.s32 %s16, 1
      %s22 = ssub.s32 %s16, 2
      %s29 = sadd.s32 1, %s24
      %p30 = scmp.ge.s32.totalorder %s29, 8
      %s31 = scalar_select %p30, 0, %s29
      %s32 = sadd.s32 1, %s23
      %s33 = scalar_select %p30, %s32, %s23
      %p34 = scmp.ge.s32.totalorder %s33, 1
      %s35 = scalar_select %p34, 0, %s33
      %s36 = ssub.s32 %s24, %s31
      %s37 = ssub.s32 %s23, %s35
      %s38 = sor.u32 %s36, %s37
      %p39 = scmp.eq.s32.totalorder %s38, 0
      %s41 = sadd.s32 %s40, 1
      %s42 = scalar_select %p39, %s40, %s41
      %p45 = pneg %p39
      %p46 = scmp.eq.s32.totalorder %s16, 7
      %p47 = por %p45, %p46
      %p48 = scmp.ne.s32.totalorder %s40, %s43
      %p49 = scmp.eq.s32.totalorder %s16, 0
      %p50 = por %p48, %p49
      %p51 = scmp.ne.s32.totalorder %s40, %s43
      %p52 = scmp.eq.s32.totalorder %s21, 7
      %p53 = por %p51, %p52
      %p54 = scmp.ne.s32.totalorder %s43, %s44
      %p55 = scmp.eq.s32.totalorder %s21, 0
      %p56 = por %p54, %p55
      %p57 = scmp.ne.s32.totalorder %s43, %s44
      %p58 = scmp.eq.s32.totalorder %s22, 7
      %p59 = por %p57, %p58
      %p61 = scmp.ne.s32.totalorder %s44, %s60
      %p62 = scmp.eq.s32.totalorder %s22, 0
      %p63 = por %p61, %p62
      %s64 = ssub.s32 %s23, %s35
      %p65 = scmp.eq.s32.totalorder %s64, 0
      %s67 = sadd.s32 %s66, 1
      %s68 = scalar_select %p65, %s66, %s67
      %p71 = pneg %p65
      %p72 = scmp.eq.s32.totalorder %s16, 7
      %p73 = por %p71, %p72
      %p74 = scmp.ne.s32.totalorder %s66, %s69
      %p75 = scmp.eq.s32.totalorder %s16, 0
      %p76 = por %p74, %p75
      %p77 = scmp.ne.s32.totalorder %s66, %s69
      %p78 = scmp.eq.s32.totalorder %s21, 7
      %p79 = por %p77, %p78
      %p80 = scmp.ne.s32.totalorder %s69, %s70
      %p81 = scmp.eq.s32.totalorder %s21, 0
      %p82 = por %p80, %p81
      %p83 = scmp.ne.s32.totalorder %s69, %s70
      %p84 = scmp.eq.s32.totalorder %s22, 7
      %p85 = por %p83, %p84
      %p87 = scmp.ne.s32.totalorder %s70, %s86
      %p88 = scmp.eq.s32.totalorder %s22, 0
      %p89 = por %p87, %p88
      %s90 = ssub.s32 %s23, %s35
      %p91 = scmp.eq.s32.totalorder %s90, 0
      %s93 = sadd.s32 %s92, 1
      %s94 = scalar_select %p91, %s92, %s93
      %p97 = pneg %p91
      %p98 = scmp.eq.s32.totalorder %s16, 7
      %p99 = por %p97, %p98
      %p100 = scmp.ne.s32.totalorder %s92, %s95
      %p101 = scmp.eq.s32.totalorder %s16, 0
      %p102 = por %p100, %p101
      %p103 = scmp.ne.s32.totalorder %s92, %s95
      %p104 = scmp.eq.s32.totalorder %s21, 7
      %p105 = por %p103, %p104
      %p106 = scmp.ne.s32.totalorder %s95, %s96
      %p107 = scmp.eq.s32.totalorder %s21, 0
      %p108 = por %p106, %p107
      %p109 = scmp.ne.s32.totalorder %s95, %s96
      %p110 = scmp.eq.s32.totalorder %s22, 7
      %p111 = por %p109, %p110
      %p113 = scmp.ne.s32.totalorder %s96, %s112
      %p114 = scmp.eq.s32.totalorder %s22, 0
      %p115 = por %p113, %p114
      %s116 = ssub.s32 %s24, %s31
      %s117 = ssub.s32 %s23, %s35
      %s118 = sor.u32 %s116, %s117
      %p119 = scmp.eq.s32.totalorder %s118, 0
      %s121 = sadd.s32 %s120, 1
      %s122 = scalar_select %p119, %s120, %s121
      %p125 = pneg %p119
      %p126 = scmp.eq.s32.totalorder %s16, 7
      %p127 = por %p125, %p126
      %p128 = scmp.ne.s32.totalorder %s120, %s123
      %p129 = scmp.eq.s32.totalorder %s16, 0
      %p130 = por %p128, %p129
      %p131 = scmp.ne.s32.totalorder %s120, %s123
      %p132 = scmp.eq.s32.totalorder %s21, 7
      %p133 = por %p131, %p132
      %p134 = scmp.ne.s32.totalorder %s123, %s124
      %p135 = scmp.eq.s32.totalorder %s21, 0
      %p136 = por %p134, %p135
      %p137 = scmp.ne.s32.totalorder %s123, %s124
      %p138 = scmp.eq.s32.totalorder %s22, 7
      %p139 = por %p137, %p138
      %p141 = scmp.ne.s32.totalorder %s124, %s140
      %p142 = scmp.eq.s32.totalorder %s22, 0
      %p143 = por %p141, %p142
      %p144 = scmp.le.s32.totalorder 1, %s16
      %p145 = scmp.lt.s32.totalorder %s16, 9
      %p146 = pnand %p144, %p145
      %p147 = pneg %p146
      // Predicated region
      $region9: #{tpu_custom_call.1} parent=5 // pred_check
        _
      $region10: #{tpu_custom_call.1} parent=5 // pred_check_branch
        %149 = sbr.rel (%p146) target = $region12
      $region11: #{tpu_custom_call.1} parent=5 // pred_region
        %s150 = ssub.s32 %s16, 1
        // Predicated region
        $region13: #{tpu_custom_call.1} parent=11 // pred_check
          %p151 = pneg %p82
        $region14: #{tpu_custom_call.1} parent=11 // pred_check_branch
          %153 = sbr.rel (%p151) target = $region16
        $region15: #{tpu_custom_call.1} parent=11 // pred_region
          %s154 = smul.u32 16, %s25
          %s156 = ssub.s32 2048, 2048
          %157 = vsyncadd [#allocation6], %s156
          %s158 = smul.addr %s154, 128
          %s159 = scalar_lea.hbm %s1, %s158
          %s160 = sshll.u32 [#allocation5], 4
          %s161 = int_to_ptr.vmem [resolvable:$true] %s160
          %166 = dma.hbm_to_vmem [thread:$0]  %s159, 2048, %s161, [#allocation6], 128, 128, 8
        $region16: #{tpu_custom_call.1} parent=11 // pred_fallthru
          _
        // Predicated region
        $region17: #{tpu_custom_call.1} parent=11 // pred_check
          %p167 = pneg %p108
        $region18: #{tpu_custom_call.1} parent=11 // pred_check_branch
          %169 = sbr.rel (%p167) target = $region20
        $region19: #{tpu_custom_call.1} parent=11 // pred_region
          %s170 = smul.u32 16, %s25
          %s172 = ssub.s32 2048, 2048
          %173 = vsyncadd [#allocation6], %s172
          %s174 = smul.addr %s170, 128
          %s175 = scalar_lea.hbm %s2, %s174
          %s176 = sshll.u32 [#allocation7], 4
          %s177 = int_to_ptr.vmem [resolvable:$true] %s176
          %182 = dma.hbm_to_vmem [thread:$0]  %s175, 2048, %s177, [#allocation6], 128, 128, 8
        $region20: #{tpu_custom_call.1} parent=11 // pred_fallthru
          _
      $region12: #{tpu_custom_call.1} parent=5 // pred_fallthru
        _
      %p183 = scmp.lt.s32.totalorder %s16, 8
      // Predicated region
      $region21: #{tpu_custom_call.1} parent=5 // pred_check
        %p184 = pneg %p183
      $region22: #{tpu_custom_call.1} parent=5 // pred_check_branch
        %186 = sbr.rel (%p184) target = $region24
      $region23: #{tpu_custom_call.1} parent=5 // pred_region
        // Predicated region
        $region25: #{tpu_custom_call.1} parent=23 // pred_check
          %p187 = pneg %p50
        $region26: #{tpu_custom_call.1} parent=23 // pred_check_branch
          %189 = sbr.rel (%p187) target = $region28
        $region27: #{tpu_custom_call.1} parent=23 // pred_region
          %s190 = sand.u32 %s40, 1
          %s191 = scalar_lea.sflag [#allocation3], %s190
          %s192 = sand.u32 %s40, 1
          %s193 = smul.addr %s192, 128
          %s194 = scalar_lea.vmem [#allocation2], %s193
          %s195 = smul.u32 16, %s23
          %s197 = ssub.s32 2048, 2048
          %198 = vsyncadd %s191, %s197
          %s199 = smul.addr %s24, 16
          %s200 = sadd.s32 %s195, %s199
          %s201 = smul.addr %s200, 128
          %s202 = scalar_lea.hbm %s0, %s201
          %s203 = sshll.u32 %s194, 4
          %s204 = int_to_ptr.vmem [resolvable:$true] %s203
          %209 = dma.hbm_to_vmem [thread:$0]  %s202, 2048, %s204, %s191, 128, 128, 8
        $region28: #{tpu_custom_call.1} parent=23 // pred_fallthru
          _
      $region24: #{tpu_custom_call.1} parent=5 // pred_fallthru
        _
      %p210 = scmp.le.s32.totalorder 1, %s16
      %p211 = scmp.lt.s32.totalorder %s16, 9
      %p212 = pnand %p210, %p211
      %p213 = pneg %p212
      // Predicated region
      $region29: #{tpu_custom_call.1} parent=5 // pred_check
        _
      $region30: #{tpu_custom_call.1} parent=5 // pred_check_branch
        %215 = sbr.rel (%p212) target = $region32
      $region31: #{tpu_custom_call.1} parent=5 // pred_region
        %s216 = ssub.s32 %s16, 1
        %s217 = sand.u32 %s43, 1
        %s218 = scalar_lea.sflag [#allocation3], %s217
        %s219 = sand.u32 %s43, 1
        %s220 = smul.addr %s219, 128
        %s221 = scalar_lea.vmem [#allocation2], %s220
        // Predicated region
        $region33: #{tpu_custom_call.1} parent=31 // pred_check
          %p222 = pneg %p56
        $region34: #{tpu_custom_call.1} parent=31 // pred_check_branch
          %224 = sbr.rel (%p222) target = $region36
        $region35: #{tpu_custom_call.1} parent=31 // pred_region
          %225 = dma.done %s218, 2048
        $region36: #{tpu_custom_call.1} parent=31 // pred_fallthru
          _
        // Predicated region
        $region37: #{tpu_custom_call.1} parent=31 // pred_check
          %p226 = pneg %p82
        $region38: #{tpu_custom_call.1} parent=31 // pred_check_branch
          %228 = sbr.rel (%p226) target = $region40
        $region39: #{tpu_custom_call.1} parent=31 // pred_region
          %229 = dma.done [#allocation6], 2048
        $region40: #{tpu_custom_call.1} parent=31 // pred_fallthru
          _
        // Predicated region
        $region41: #{tpu_custom_call.1} parent=31 // pred_check
          %p230 = pneg %p108
        $region42: #{tpu_custom_call.1} parent=31 // pred_check_branch
          %232 = sbr.rel (%p230) target = $region44
        $region43: #{tpu_custom_call.1} parent=31 // pred_region
          %233 = dma.done [#allocation6], 2048
        $region44: #{tpu_custom_call.1} parent=31 // pred_fallthru
          _
        %s234 = sand.u32 %s43, 1
        %s235 = scalar_lea.sflag [#allocation3], %s234
        %s236 = sand.u32 %s43, 1
        %s237 = smul.addr %s236, 128
        %s238 = scalar_lea.vmem [#allocation2], %s237
        %p239 = pneg %p56
        %p240 = pneg %p53
        %p241 = pneg %p82
        %p242 = pneg %p79
        %p243 = pneg %p108
        %p244 = pneg %p105
        %p245 = pneg %p136
        %p246 = pneg %p133
        %s247 = sand.u32 %s123, 1
        %s248 = scalar_lea.sflag [#allocation4], %s247
        %s249 = sand.u32 %s123, 1
        %s250 = smul.addr %s249, 128
        %s251 = scalar_lea.vmem [#allocation8], %s250
        %s252 = smul.u32 16, %s25
        %s253 = smul.u32 16, %s25
        %s254 = smul.u32 16, %s25
        %s255 = smul.u32 16, %s25
        %v256 = vld [vmem:[%s221] sm:$0xff]
        %v257 = vld [vmem:[%s221 + $0x8] sm:$0xff]
        %v258 = vld [vmem:[%s221 + $0x10] sm:$0xff]
        %v259 = vld [vmem:[%s221 + $0x18] sm:$0xff]
        %v260 = vld [vmem:[%s221 + $0x20] sm:$0xff]
        %v261 = vld [vmem:[%s221 + $0x28] sm:$0xff]
        %v262 = vld [vmem:[%s221 + $0x30] sm:$0xff]
        %v263 = vld [vmem:[%s221 + $0x38] sm:$0xff]
        %v264 = vld [vmem:[%s221 + $0x40] sm:$0xff]
        %v265 = vld [vmem:[%s221 + $0x48] sm:$0xff]
        %v266 = vld [vmem:[%s221 + $0x50] sm:$0xff]
        %v267 = vld [vmem:[%s221 + $0x58] sm:$0xff]
        %v268 = vld [vmem:[%s221 + $0x60] sm:$0xff]
        %v269 = vld [vmem:[%s221 + $0x68] sm:$0xff]
        %v270 = vld [vmem:[%s221 + $0x70] sm:$0xff]
        %v271 = vld [vmem:[%s221 + $0x78] sm:$0xff]
        %v272 = vld [vmem:[#allocation5] sm:$0xff]
        %v273 = vld [vmem:[#allocation5 + $0x8] sm:$0xff]
        %v274 = vld [vmem:[#allocation5 + $0x10] sm:$0xff]
        %v275 = vld [vmem:[#allocation5 + $0x18] sm:$0xff]
        %v276 = vld [vmem:[#allocation5 + $0x20] sm:$0xff]
        %v277 = vld [vmem:[#allocation5 + $0x28] sm:$0xff]
        %v278 = vld [vmem:[#allocation5 + $0x30] sm:$0xff]
        %v279 = vld [vmem:[#allocation5 + $0x38] sm:$0xff]
        %v280 = vld [vmem:[#allocation5 + $0x40] sm:$0xff]
        %v281 = vld [vmem:[#allocation5 + $0x48] sm:$0xff]
        %v282 = vld [vmem:[#allocation5 + $0x50] sm:$0xff]
        %v283 = vld [vmem:[#allocation5 + $0x58] sm:$0xff]
        %v284 = vld [vmem:[#allocation5 + $0x60] sm:$0xff]
        %v285 = vld [vmem:[#allocation5 + $0x68] sm:$0xff]
        %v286 = vld [vmem:[#allocation5 + $0x70] sm:$0xff]
        %v287 = vld [vmem:[#allocation5 + $0x78] sm:$0xff]
        %v288 = vld [vmem:[#allocation7] sm:$0xff]
        %v289 = vld [vmem:[#allocation7 + $0x8] sm:$0xff]
        %v290 = vld [vmem:[#allocation7 + $0x10] sm:$0xff]
        %v291 = vld [vmem:[#allocation7 + $0x18] sm:$0xff]
        %v292 = vld [vmem:[#allocation7 + $0x20] sm:$0xff]
        %v293 = vld [vmem:[#allocation7 + $0x28] sm:$0xff]
        %v294 = vld [vmem:[#allocation7 + $0x30] sm:$0xff]
        %v295 = vld [vmem:[#allocation7 + $0x38] sm:$0xff]
        %v296 = vld [vmem:[#allocation7 + $0x40] sm:$0xff]
        %v297 = vld [vmem:[#allocation7 + $0x48] sm:$0xff]
        %v298 = vld [vmem:[#allocation7 + $0x50] sm:$0xff]
        %v299 = vld [vmem:[#allocation7 + $0x58] sm:$0xff]
        %v300 = vld [vmem:[#allocation7 + $0x60] sm:$0xff]
        %v301 = vld [vmem:[#allocation7 + $0x68] sm:$0xff]
        %v302 = vld [vmem:[#allocation7 + $0x70] sm:$0xff]
        %v303 = vld [vmem:[#allocation7 + $0x78] sm:$0xff]
        %304 = vrot.lane.b32.xlu0 %v256, 1
        %v305 = vpop.permute.xlu0 %304
        %306 = vrot.lane.b32.xlu0 %v257, 1
        %v307 = vpop.permute.xlu0 %306
        %308 = vrot.lane.b32.xlu0 %v258, 1
        %v309 = vpop.permute.xlu0 %308
        %310 = vrot.lane.b32.xlu0 %v259, 1
        %v311 = vpop.permute.xlu0 %310
        %312 = vrot.lane.b32.xlu0 %v260, 1
        %v313 = vpop.permute.xlu0 %312
        %314 = vrot.lane.b32.xlu0 %v261, 1
        %v315 = vpop.permute.xlu0 %314
        %316 = vrot.lane.b32.xlu0 %v262, 1
        %v317 = vpop.permute.xlu0 %316
        %318 = vrot.lane.b32.xlu0 %v263, 1
        %v319 = vpop.permute.xlu0 %318
        %320 = vrot.lane.b32.xlu0 %v264, 1
        %v321 = vpop.permute.xlu0 %320
        %322 = vrot.lane.b32.xlu0 %v265, 1
        %v323 = vpop.permute.xlu0 %322
        %324 = vrot.lane.b32.xlu0 %v266, 1
        %v325 = vpop.permute.xlu0 %324
        %326 = vrot.lane.b32.xlu0 %v267, 1
        %v327 = vpop.permute.xlu0 %326
        %328 = vrot.lane.b32.xlu0 %v268, 1
        %v329 = vpop.permute.xlu0 %328
        %330 = vrot.lane.b32.xlu0 %v269, 1
        %v331 = vpop.permute.xlu0 %330
        %332 = vrot.lane.b32.xlu0 %v270, 1
        %v333 = vpop.permute.xlu0 %332
        %334 = vrot.lane.b32.xlu0 %v271, 1
        %v335 = vpop.permute.xlu0 %334
        %v336 = vmul.f32 %v256, %v272
        %v337 = vmul.f32 %v257, %v273
        %v338 = vmul.f32 %v258, %v274
        %v339 = vmul.f32 %v259, %v275
        %v340 = vmul.f32 %v260, %v276
        %v341 = vmul.f32 %v261, %v277
        %v342 = vmul.f32 %v262, %v278
        %v343 = vmul.f32 %v263, %v279
        %v344 = vmul.f32 %v264, %v280
        %v345 = vmul.f32 %v265, %v281
        %v346 = vmul.f32 %v266, %v282
        %v347 = vmul.f32 %v267, %v283
        %v348 = vmul.f32 %v268, %v284
        %v349 = vmul.f32 %v269, %v285
        %v350 = vmul.f32 %v270, %v286
        %v351 = vmul.f32 %v271, %v287
        %v352 = vmul.f32 %v305, %v288
        %v353 = vmul.f32 %v307, %v289
        %v354 = vmul.f32 %v309, %v290
        %v355 = vmul.f32 %v311, %v291
        %v356 = vmul.f32 %v313, %v292
        %v357 = vmul.f32 %v315, %v293
        %v358 = vmul.f32 %v317, %v294
        %v359 = vmul.f32 %v319, %v295
        %v360 = vmul.f32 %v321, %v296
        %v361 = vmul.f32 %v323, %v297
        %v362 = vmul.f32 %v325, %v298
        %v363 = vmul.f32 %v327, %v299
        %v364 = vmul.f32 %v329, %v300
        %v365 = vmul.f32 %v331, %v301
        %v366 = vmul.f32 %v333, %v302
        %v367 = vmul.f32 %v335, %v303
        %v368 = vadd.f32 %v336, %v352
        %v369 = vadd.f32 %v337, %v353
        %v370 = vadd.f32 %v338, %v354
        %v371 = vadd.f32 %v339, %v355
        %v372 = vadd.f32 %v340, %v356
        %v373 = vadd.f32 %v341, %v357
        %v374 = vadd.f32 %v342, %v358
        %v375 = vadd.f32 %v343, %v359
        %v376 = vadd.f32 %v344, %v360
        %v377 = vadd.f32 %v345, %v361
        %v378 = vadd.f32 %v346, %v362
        %v379 = vadd.f32 %v347, %v363
        %v380 = vadd.f32 %v348, %v364
        %v381 = vadd.f32 %v349, %v365
        %v382 = vadd.f32 %v350, %v366
        %v383 = vadd.f32 %v351, %v367
        %384 = vst [vmem:[%s251] sm:$0xff] %v368
        %385 = vst [vmem:[%s251 + $0x8] sm:$0xff] %v369
        %386 = vst [vmem:[%s251 + $0x10] sm:$0xff] %v370
        %387 = vst [vmem:[%s251 + $0x18] sm:$0xff] %v371
        %388 = vst [vmem:[%s251 + $0x20] sm:$0xff] %v372
        %389 = vst [vmem:[%s251 + $0x28] sm:$0xff] %v373
        %390 = vst [vmem:[%s251 + $0x30] sm:$0xff] %v374
        %391 = vst [vmem:[%s251 + $0x38] sm:$0xff] %v375
        %392 = vst [vmem:[%s251 + $0x40] sm:$0xff] %v376
        %393 = vst [vmem:[%s251 + $0x48] sm:$0xff] %v377
        %394 = vst [vmem:[%s251 + $0x50] sm:$0xff] %v378
        %395 = vst [vmem:[%s251 + $0x58] sm:$0xff] %v379
        %396 = vst [vmem:[%s251 + $0x60] sm:$0xff] %v380
        %397 = vst [vmem:[%s251 + $0x68] sm:$0xff] %v381
        %398 = vst [vmem:[%s251 + $0x70] sm:$0xff] %v382
        %399 = vst [vmem:[%s251 + $0x78] sm:$0xff] %v383
        %s400 = sand.u32 %s123, 1
        %s401 = scalar_lea.sflag [#allocation4], %s400
        %s402 = sand.u32 %s123, 1
        %s403 = smul.addr %s402, 128
        %s404 = scalar_lea.vmem [#allocation8], %s403
        // Predicated region
        $region45: #{tpu_custom_call.1} parent=31 // pred_check
          %p405 = pneg %p133
        $region46: #{tpu_custom_call.1} parent=31 // pred_check_branch
          %407 = sbr.rel (%p405) target = $region48
        $region47: #{tpu_custom_call.1} parent=31 // pred_region
          %s408 = smul.u32 16, %s25
          %s410 = ssub.s32 2048, 2048
          %411 = vsyncadd %s401, %s410
          %s412 = smul.addr %s26, 16
          %s413 = sadd.s32 %s408, %s412
          %s414 = smul.addr %s413, 128
          %s415 = scalar_lea.hbm %s3, %s414
          %s416 = sshll.u32 %s404, 4
          %s417 = int_to_ptr.vmem [resolvable:$true] %s416
          %422 = dma.vmem_to_hbm [thread:$0]  %s417, 2048, %s415, %s401, 128, 128, 8
        $region48: #{tpu_custom_call.1} parent=31 // pred_fallthru
          _
      $region32: #{tpu_custom_call.1} parent=5 // pred_fallthru
        _
      %p423 = scmp.le.s32.totalorder 2, %s16
      // Predicated region
      $region49: #{tpu_custom_call.1} parent=5 // pred_check
        %p424 = pneg %p423
      $region50: #{tpu_custom_call.1} parent=5 // pred_check_branch
        %426 = sbr.rel (%p424) target = $region52
      $region51: #{tpu_custom_call.1} parent=5 // pred_region
        %s427 = ssub.s32 %s16, 2
        // Predicated region
        $region53: #{tpu_custom_call.1} parent=51 // pred_check
          %p428 = pneg %p139
        $region54: #{tpu_custom_call.1} parent=51 // pred_check_branch
          %430 = sbr.rel (%p428) target = $region56
        $region55: #{tpu_custom_call.1} parent=51 // pred_region
          %s431 = sand.u32 %s124, 1
          %s432 = scalar_lea.sflag [#allocation4], %s431
          %s433 = sand.u32 %s124, 1
          %s434 = smul.addr %s433, 128
          %s435 = scalar_lea.vmem [#allocation8], %s434
          %436 = dma.done %s432, 2048
        $region56: #{tpu_custom_call.1} parent=51 // pred_fallthru
          _
      $region52: #{tpu_custom_call.1} parent=5 // pred_fallthru
        _
    $region6: #{tpu_custom_call.1} parent=1 // loop_footer
      %s20 = sadd.s32 1, %s16
    $region7: #{tpu_custom_call.1} parent=1 // loop_footer_branch
      %15 = sbr.rel target = $region3
    $region8: #{tpu_custom_call.1} parent=1 // loop_exit
      _
    %437 = vsyncpa [#allocation3], 1
    %s438 = scalar_lea.sflag [#allocation3], 1
    %439 = vsyncpa %s438, 1
    %440 = vsyncpa [#allocation6], 1
    %441 = vsyncpa [#allocation4], 1
    %s442 = scalar_lea.sflag [#allocation4], 1
    %443 = vsyncpa %s442, 1

</llo_original>
